<compile_context>
chip_gen: v7x
topology: tpu7x:2x2x1
jax: 0.10.0
libtpu: 0.0.40
codegen_flags: <defaults>
</compile_context>

<pallas_src>
import jax
import jax.numpy as jnp
from jax.experimental import pallas as pl
from jax.experimental.pallas import tpu as pltpu


# ----------------------------- Pallas kernel ------------------------------ #
def unimodal_ehr_confidence_kernel(
    x_ref,          # (B, T, F)            f32
    mask_norm_ref,  # (B, T)               f32, rows already normalised (sum to 1)
    w_enc_ref,      # (F + 1, D_full)      f32, last row = b_enc
    w_conf_ref,     # (D_full + 1, C)      f32, last row = b_conf
    out_ref,        # (B, C)               f32
):
    f = x_ref.shape[2]
    d_full = w_conf_ref.shape[0] - 1

    # ---- EHR encoder stand-in: masked mean over time (normalised in wrapper) ----
    x = x_ref[...]                                   # (B, T, F)
    mn = mask_norm_ref[...]                          # (B, T)
    xs = jnp.sum(x * mn[:, :, None], axis=1)         # (B, F)

    # ---- frozen biases live as the last row of each weight (static slices) ----
    w_enc = w_enc_ref[:f, :]                         # (F, D_full)
    b_enc = w_enc_ref[f:, :]                         # (1, D_full)
    w_conf = w_conf_ref[:d_full, :]                  # (D_full, C)
    b_conf = w_conf_ref[d_full:, :]                  # (1, C)

    # ---- encoder projection + ReLU -> full_ehr_feats ----
    feats = jnp.maximum(
        jnp.dot(xs, w_enc, preferred_element_type=jnp.float32) + b_enc, 0.0
    )                                                # (B, D_full)

    # ---- ConfidencePredictor linear head ----
    out_ref[...] = (
        jnp.dot(feats, w_conf, preferred_element_type=jnp.float32) + b_conf
    )                                                # (B, C)


# ------------------------------- wrapper ----------------------------------- #
@jax.jit
def unimodal_ehr_confidence_forward(x, seq_lengths, params):
    B, T, F_EHR = x.shape
    D_FULL = params["w_enc"].shape[1]
    C = params["w_conf"].shape[1]

    # Wrapper-side (amortised / XLA-fused) prep: length mask + normalisation,
    # and folding the frozen biases into the frozen weights (4 operands total).
    mask = (jnp.arange(T)[None, :] < seq_lengths[:, None]).astype(jnp.float32)
    denom = jnp.maximum(jnp.sum(mask, axis=1, keepdims=True), 1.0)
    mask_norm = mask / denom                                   # (B, T)

    w_enc_aug = jnp.concatenate(
        [params["w_enc"], params["b_enc"]], axis=0
    ).astype(jnp.float32)                                      # (F+1, D_full)
    w_conf_aug = jnp.concatenate(
        [params["w_conf"], params["b_conf"]], axis=0
    ).astype(jnp.float32)                                      # (D_full+1, C)

    flops = 2 * B * T * F_EHR + 2 * B * (F_EHR * D_FULL + D_FULL * C)
    bytes_accessed = 4 * (
        x.size + mask_norm.size + w_enc_aug.size + w_conf_aug.size + B * C
    )
    cost = pl.CostEstimate(
        flops=flops, transcendentals=0, bytes_accessed=bytes_accessed
    )

    vmem = pl.BlockSpec(memory_space=pltpu.MemorySpace.VMEM)
    conf = pl.pallas_call(
        unimodal_ehr_confidence_kernel,
        out_shape=jax.ShapeDtypeStruct((B, C), jnp.float32),
        in_specs=[vmem] * 4,
        out_specs=vmem,
        cost_estimate=cost,
    )(x, mask_norm, w_enc_aug, w_conf_aug)

    # torch's .squeeze(-1): only drops the last dim when num_classes == 1.
    if conf.shape[-1] == 1:
        conf = conf[..., 0]
    return {"c-unimodal_ehr": conf}


# --------------------------- plain-JAX reference --------------------------- #
def reference_forward(x, seq_lengths, params):
    T = x.shape[1]
    mask = (jnp.arange(T)[None, :] < seq_lengths[:, None]).astype(jnp.float32)
    denom = jnp.maximum(jnp.sum(mask, axis=1, keepdims=True), 1.0)
    xs = jnp.sum(x * (mask / denom)[:, :, None], axis=1)
    feats = jax.nn.relu(xs @ params["w_enc"] + params["b_enc"])
    conf = feats @ params["w_conf"] + params["b_conf"]
    if conf.shape[-1] == 1:
        conf = conf[..., 0]
    return conf


# -------------------------------- params ----------------------------------- #
def init_params(key, f_ehr, d_full, n_cls):
    keys = jax.random.split(key, 4)
    s = 0.05
    return {
        # TODO(synk): stands in for the frozen pretrained LSTM encoder weights
        # and the ConfidencePredictor checkpoint (torch.load not translatable).
        "w_enc":  s * jax.random.normal(keys[0], (f_ehr, d_full), jnp.float32),
        "b_enc":  s * jax.random.normal(keys[1], (1, d_full), jnp.float32),
        "w_conf": s * jax.random.normal(keys[2], (d_full, n_cls), jnp.float32),
        "b_conf": s * jax.random.normal(keys[3], (1, n_cls), jnp.float32),
    }


if __name__ == "__main__":
    B, T, F_EHR = 4, 8, 16        # EHR data: (batch, time, features)
    D_FULL, N_CLS = 64, 8         # ehr_model.full_feats_dim, args.num_classes

    key = jax.random.PRNGKey(0)
    k_x, k_p = jax.random.split(key)

    x = jax.random.normal(k_x, (B, T, F_EHR), jnp.float32)
    seq_lengths = jnp.array([8, 5, 8, 3], jnp.int32)

    params = init_params(k_p, F_EHR, D_FULL, N_CLS)

    out = unimodal_ehr_confidence_forward(x, seq_lengths, params)
    conf = jax.block_until_ready(out["c-unimodal_ehr"])

    ref = reference_forward(x, seq_lengths, params)
    assert conf.shape == (B, N_CLS)
    assert bool(jnp.all(jnp.isfinite(conf)))
    assert bool(jnp.allclose(conf, ref, rtol=1e-4, atol=1e-4)), float(
        jnp.max(jnp.abs(conf - ref))
    )
    print("KERNEL_OK")
</pallas_src>

<mosaic_0001>
module attributes {stable_mosaic.version = 11 : i64} {
  func.func @unimodal_ehr_confidence_kernel(%arg0: memref<4x8x16xf32, #tpu.memory_space<vmem>>, %arg1: memref<4x8xf32, #tpu.memory_space<vmem>>, %arg2: memref<17x64xf32, #tpu.memory_space<vmem>>, %arg3: memref<65x8xf32, #tpu.memory_space<vmem>>, %arg4: memref<4x8xf32, #tpu.memory_space<vmem>>) attributes {dimension_semantics = [], scalar_prefetch = 0 : i64, scratch_operands = 0 : i64, tpu.core_type = #tpu.core_type<tc>} {
    %c0 = arith.constant 0 : index
    %c0_0 = arith.constant 0 : index
    %c0_1 = arith.constant 0 : index
    %0 = vector.load %arg0[%c0, %c0_0, %c0_1] : memref<4x8x16xf32, #tpu.memory_space<vmem>>, vector<4x8x16xf32>
    %c0_2 = arith.constant 0 : index
    %c0_3 = arith.constant 0 : index
    %1 = vector.load %arg1[%c0_2, %c0_3] : memref<4x8xf32, #tpu.memory_space<vmem>>, vector<4x8xf32>
    %2 = vector.shape_cast %1 : vector<4x8xf32> to vector<4x8x1xf32>
    %3 = vector.broadcast %2 : vector<4x8x1xf32> to vector<4x8x16xf32>
    %4 = arith.mulf %0, %3 : vector<4x8x16xf32>
    %cst = arith.constant dense<0.000000e+00> : vector<4x16xf32>
    %5 = vector.multi_reduction <add>, %4, %cst [1] : vector<4x8x16xf32> to vector<4x16xf32>
    %c0_4 = arith.constant 0 : index
    %c0_5 = arith.constant 0 : index
    %6 = vector.load %arg2[%c0_4, %c0_5] : memref<17x64xf32, #tpu.memory_space<vmem>>, vector<16x64xf32>
    %c16 = arith.constant 16 : index
    %c0_6 = arith.constant 0 : index
    %7 = vector.load %arg2[%c16, %c0_6] : memref<17x64xf32, #tpu.memory_space<vmem>>, vector<1x64xf32>
    %c0_7 = arith.constant 0 : index
    %c0_8 = arith.constant 0 : index
    %8 = vector.load %arg3[%c0_7, %c0_8] : memref<65x8xf32, #tpu.memory_space<vmem>>, vector<64x8xf32>
    %c64 = arith.constant 64 : index
    %c0_9 = arith.constant 0 : index
    %9 = vector.load %arg3[%c64, %c0_9] : memref<65x8xf32, #tpu.memory_space<vmem>>, vector<1x8xf32>
    %cst_10 = arith.constant dense<0.000000e+00> : vector<4x64xf32>
    %10 = tpu.matmul %5, %6, %cst_10 {dimension_numbers = #tpu.dot_dimension_numbers<[1], [0], [0], [1], [0, 0, 1, 1], [], []>} : vector<4x16xf32>, vector<16x64xf32>, vector<4x64xf32> -> vector<4x64xf32>
    %11 = vector.broadcast %7 : vector<1x64xf32> to vector<4x64xf32>
    %12 = arith.addf %10, %11 : vector<4x64xf32>
    %cst_11 = arith.constant 0.000000e+00 : f32
    %13 = vector.broadcast %cst_11 : f32 to vector<4x64xf32>
    %14 = arith.maximumf %12, %13 : vector<4x64xf32>
    %cst_12 = arith.constant dense<0.000000e+00> : vector<4x8xf32>
    %15 = tpu.matmul %14, %8, %cst_12 {dimension_numbers = #tpu.dot_dimension_numbers<[1], [0], [0], [1], [0, 0, 1, 1], [], []>} : vector<4x64xf32>, vector<64x8xf32>, vector<4x8xf32> -> vector<4x8xf32>
    %16 = vector.broadcast %9 : vector<1x8xf32> to vector<4x8xf32>
    %17 = arith.addf %15, %16 : vector<4x8xf32>
    %c0_13 = arith.constant 0 : index
    %c0_14 = arith.constant 0 : index
    %18 = vector.load %arg4[%c0_13, %c0_14] : memref<4x8xf32, #tpu.memory_space<vmem>>, vector<4x8xf32>
    tpu.vector_store %arg4[%c0_13, %c0_14], %17 {strides = array<i32>} : memref<4x8xf32, #tpu.memory_space<vmem>>, vector<4x8xf32>,
    return
  }
}

</mosaic_0001>

<llo_original>
// kernel: unimodal_ehr_confidence_forward.1
$region0: #{unimodal_ehr_confidence_forward.1}
  #allocation0 [shape = 'u32[]', space=smem, size = 0x4, offset = 0x4, fixed_abs, tag = 'smem constant byte address 0x4 - core index']
  #allocation1 [shape = 'u32[144,128]{1,0:T(1,128)}', space=vmem, size = 0x12000, scoped, tag = 'internal scratch']
  %s0 = inlined_call_operand.vmem [shape: f32[4,8,16], index: 0, kind: input, shape index: {}]
  %s1 = inlined_call_operand.vmem [shape: f32[4,8], index: 1, kind: input, shape index: {}]
  %s2 = inlined_call_operand.vmem [shape: f32[17,64], index: 2, kind: input, shape index: {}]
  %s3 = inlined_call_operand.vmem [shape: f32[65,8], index: 3, kind: input, shape index: {}]
  %s4 = inlined_call_operand.hbm [shape: f32[4,8], index: 4, kind: output, shape index: {}]
  %s5 = sld [smem:[#allocation0]]
  $region26: #{unimodal_ehr_confidence_forward.1} parent=0
    _
  %s7 = ssub.s32 1, %s5
  %s8 = scalar_select 0, %s7, %s5
  $region1: #{unimodal_ehr_confidence_forward.1} parent=0
    #allocation2 [shape = 'u8[2048]{0}', space=vmem, size = 0x800, scoped, tag = 'output window, operand 0, single buffered']
    #allocation3 [shape = 's32[1]{0}', space=sflag, size = 0x4, scoped, tag = 'scoped memory for unimodal_ehr_confidence_forward.1']
    %9 = vsyncpa [#allocation3], 0
    // Predicated region
    $region2: #{unimodal_ehr_confidence_forward.1} parent=1 // pred_check
      _
    $region3: #{unimodal_ehr_confidence_forward.1} parent=1 // pred_check_branch
      %11 = sbr.rel (0) target = $region5
    $region4: #{unimodal_ehr_confidence_forward.1} parent=1 // pred_region
      _
    $region5: #{unimodal_ehr_confidence_forward.1} parent=1 // pred_fallthru
      _
    // Predicated region
    $region6: #{unimodal_ehr_confidence_forward.1} parent=1 // pred_check
      _
    $region7: #{unimodal_ehr_confidence_forward.1} parent=1 // pred_check_branch
      %13 = sbr.rel (0) target = $region9
    $region8: #{unimodal_ehr_confidence_forward.1} parent=1 // pred_region
      _
    $region9: #{unimodal_ehr_confidence_forward.1} parent=1 // pred_fallthru
      _
    // Predicated region
    $region10: #{unimodal_ehr_confidence_forward.1} parent=1 // pred_check
      _
    $region11: #{unimodal_ehr_confidence_forward.1} parent=1 // pred_check_branch
      %15 = sbr.rel (0) target = $region13
    $region12: #{unimodal_ehr_confidence_forward.1} parent=1 // pred_region
      _
    $region13: #{unimodal_ehr_confidence_forward.1} parent=1 // pred_fallthru
      _
    // Predicated region
    $region14: #{unimodal_ehr_confidence_forward.1} parent=1 // pred_check
      _
    $region15: #{unimodal_ehr_confidence_forward.1} parent=1 // pred_check_branch
      %17 = sbr.rel (0) target = $region17
    $region16: #{unimodal_ehr_confidence_forward.1} parent=1 // pred_region
      _
    $region17: #{unimodal_ehr_confidence_forward.1} parent=1 // pred_fallthru
      _
    %v18 = vld [vmem:[%s0] sm:$0xff]
    %v19 = vld [vmem:[%s0 + $0x8] sm:$0xff]
    %v20 = vld [vmem:[%s0 + $0x10] sm:$0xff]
    %v21 = vld [vmem:[%s0 + $0x18] sm:$0xff]
    %v22 = vld [vmem:[%s1] sm:$0xf]
    %v23 = vlaneseq
    %v24 = vshrl.u32 %v23, 7
    %v25 = vsub.s32 0, %v24
    %v26 = vrot.slane %v22, %v25
    %28 = vbcast.lane.b32.xlu0 %v26, 256
    %v29 = vpop.permute.xlu0 %28
    %v30 = vlaneseq
    %v31 = vshrl.u32 %v30, 7
    %v32 = vsub.s32 1, %v31
    %v33 = vrot.slane %v22, %v32
    %35 = vbcast.lane.b32.xlu0 %v33, 256
    %v36 = vpop.permute.xlu0 %35
    %v37 = vlaneseq
    %v38 = vshrl.u32 %v37, 7
    %v39 = vsub.s32 2, %v38
    %v40 = vrot.slane %v22, %v39
    %42 = vbcast.lane.b32.xlu0 %v40, 256
    %v43 = vpop.permute.xlu0 %42
    %v44 = vlaneseq
    %v45 = vshrl.u32 %v44, 7
    %v46 = vsub.s32 3, %v45
    %v47 = vrot.slane %v22, %v46
    %49 = vbcast.lane.b32.xlu0 %v47, 256
    %v50 = vpop.permute.xlu0 %49
    %v51 = vmul.f32 %v18, %v29
    %v52 = vmul.f32 %v19, %v36
    %v53 = vmul.f32 %v20, %v43
    %v54 = vmul.f32 %v21, %v50
    %vm55 = vcmask 130048
    %v56 = vsel %vm55, %v51, 0.0
    %v57 = vrot.slane %v56, 4
    %v58 = vadd.f32 %v56, %v57
    %v59 = vrot.slane %v58, 2
    %v60 = vadd.f32 %v58, %v59
    %v61 = vrot.slane %v60, 1
    %v62 = vadd.f32 %v60, %v61
    %v63 = vsel %vm55, %v52, 0.0
    %v64 = vrot.slane %v63, 4
    %v65 = vadd.f32 %v63, %v64
    %v66 = vrot.slane %v65, 2
    %v67 = vadd.f32 %v65, %v66
    %v68 = vrot.slane %v67, 1
    %v69 = vadd.f32 %v67, %v68
    %v70 = vsel %vm55, %v53, 0.0
    %v71 = vrot.slane %v70, 4
    %v72 = vadd.f32 %v70, %v71
    %v73 = vrot.slane %v72, 2
    %v74 = vadd.f32 %v72, %v73
    %v75 = vrot.slane %v74, 1
    %v76 = vadd.f32 %v74, %v75
    %v77 = vsel %vm55, %v54, 0.0
    %v78 = vrot.slane %v77, 4
    %v79 = vadd.f32 %v77, %v78
    %v80 = vrot.slane %v79, 2
    %v81 = vadd.f32 %v79, %v80
    %v82 = vrot.slane %v81, 1
    %v83 = vadd.f32 %v81, %v82
    %v84 = vld [vmem:[%s2] sm:$0xff]
    %v85 = vld [vmem:[%s2 + $0x8] sm:$0xff]
    %v86 = vld [vmem:[%s2 + $0x10] sm:$0x1]
    %v87 = vld [vmem:[%s3] sm:$0xff]
    %v88 = vld [vmem:[%s3 + $0x8] sm:$0xff]
    %v89 = vld [vmem:[%s3 + $0x10] sm:$0xff]
    %v90 = vld [vmem:[%s3 + $0x18] sm:$0xff]
    %v91 = vld [vmem:[%s3 + $0x20] sm:$0xff]
    %v92 = vld [vmem:[%s3 + $0x28] sm:$0xff]
    %v93 = vld [vmem:[%s3 + $0x30] sm:$0xff]
    %v94 = vld [vmem:[%s3 + $0x38] sm:$0xff]
    %v95 = vld [vmem:[%s3 + $0x40] sm:$0x1]
    %v96 = vlaneseq
    %v97 = vshrl.u32 %v96, 7
    %v98 = vsub.s32 0, %v97
    %v99 = vrot.slane %v86, %v98
    %vm104 = vcmask 1041409
    %v105 = vsel %vm104, %v69, %v62
    %vm106 = vcmask 1042434
    %v107 = vsel %vm106, %v76, %v105
    %vm108 = vcmask 1043459
    %v109 = vsel %vm108, %v83, %v107
    %v110 = vsel %vm55, %v109, 0
    %112 = vmatprep.subr.mxu0 0.0
    %113 = vmatpush1.msra.mxu0 %v84
    %114 = vmatprep.subr.mxu0 0.0
    %115 = vmatpush1.msra.mxu0 %v85
    %116 = vmatprep.subr.mxu0 0.0
    %117 = vmatpush1.msra.mxu0 0.0
    %118 = vmatprep.subr.mxu0 0.0
    %119 = vmatpush1.msra.mxu0 0.0
    %120 = vmatprep.subr.mxu0 0.0
    %121 = vmatpush1.msra.mxu0 0.0
    %122 = vmatprep.subr.mxu0 0.0
    %123 = vmatpush1.msra.mxu0 0.0
    %124 = vmatprep.subr.mxu0 0.0
    %125 = vmatpush1.msra.mxu0 0.0
    %126 = vmatprep.subr.mxu0 0.0
    %127 = vmatpush1.msra.mxu0 0.0
    %128 = vmatprep.subr.mxu0 0.0
    %129 = vmatpush1.msra.mxu0 0.0
    %130 = vmatprep.subr.mxu0 0.0
    %131 = vmatpush1.msra.mxu0 0.0
    %132 = vmatprep.subr.mxu0 0.0
    %133 = vmatpush1.msra.mxu0 0.0
    %134 = vmatprep.subr.mxu0 0.0
    %135 = vmatpush1.msra.mxu0 0.0
    %136 = vmatprep.subr.mxu0 0.0
    %137 = vmatpush1.msra.mxu0 0.0
    %138 = vmatprep.subr.mxu0 0.0
    %139 = vmatpush1.msra.mxu0 0.0
    %140 = vmatprep.subr.mxu0 0.0
    %141 = vmatpush1.msra.mxu0 0.0
    %142 = vmatprep.subr.mxu0 0.0
    %143 = vmatpush1.msra.mxu0 0.0
    %144 = vmatprep.subr.mxu0 0.0
    %145 = vmatpush1.msra.mxu0 0.0
    %146 = vmatprep.subr.mxu0 0.0
    %147 = vmatpush1.msra.mxu0 0.0
    %148 = vmatprep.subr.mxu0 0.0
    %149 = vmatpush1.msra.mxu0 0.0
    %150 = vmatprep.subr.mxu0 0.0
    %151 = vmatpush1.msra.mxu0 0.0
    %152 = vmatprep.subr.mxu0 0.0
    %153 = vmatpush1.msra.mxu0 0.0
    %154 = vmatprep.subr.mxu0 0.0
    %155 = vmatpush1.msra.mxu0 0.0
    %156 = vmatprep.subr.mxu0 0.0
    %157 = vmatpush1.msra.mxu0 0.0
    %158 = vmatprep.subr.mxu0 0.0
    %159 = vmatpush1.msra.mxu0 0.0
    %160 = vmatprep.subr.mxu0 0.0
    %161 = vmatpush1.msra.mxu0 0.0
    %162 = vmatprep.subr.mxu0 0.0
    %163 = vmatpush1.msra.mxu0 0.0
    %164 = vmatprep.subr.mxu0 0.0
    %165 = vmatpush1.msra.mxu0 0.0
    %166 = vmatprep.subr.mxu0 0.0
    %167 = vmatpush1.msra.mxu0 0.0
    %168 = vmatprep.subr.mxu0 0.0
    %169 = vmatpush1.msra.mxu0 0.0
    %170 = vmatprep.subr.mxu0 0.0
    %171 = vmatpush1.msra.mxu0 0.0
    %172 = vmatprep.subr.mxu0 0.0
    %173 = vmatpush1.msra.mxu0 0.0
    %174 = vmatprep.subr.mxu0 0.0
    %175 = vmatpush1.msra.mxu0 0.0
    %176 = vmatprep.mubr.f32.mxu0 0.0
    %177 = vmatmul.mubr.f32.gmra.mrb[0].mxu0 %v110
    %v178 = vpop.f32.mrb[0].mxu0
    %v179 = vadd.f32 %v99, %v178
    %v180 = vpop.f32.mrb[0].mxu0
    %181 = vdwg.mxu0
    %v182 = vmax.f32 %v179, 0.0
    %v183 = vlaneseq
    %v184 = vshrl.u32 %v183, 7
    %v185 = vsub.s32 0, %v184
    %v186 = vrot.slane %v95, %v185
    %vm187 = vcmask 523264
    %v189 = vsel %vm187, %v182, 0
    %191 = vmatprep.subr.mxu0 0.0
    %192 = vmatpush1.msra.mxu0 %v87
    %193 = vmatprep.subr.mxu0 0.0
    %194 = vmatpush1.msra.mxu0 %v88
    %195 = vmatprep.subr.mxu0 0.0
    %196 = vmatpush1.msra.mxu0 %v89
    %197 = vmatprep.subr.mxu0 0.0
    %198 = vmatpush1.msra.mxu0 %v90
    %199 = vmatprep.subr.mxu0 0.0
    %200 = vmatpush1.msra.mxu0 %v91
    %201 = vmatprep.subr.mxu0 0.0
    %202 = vmatpush1.msra.mxu0 %v92
    %203 = vmatprep.subr.mxu0 0.0
    %204 = vmatpush1.msra.mxu0 %v93
    %205 = vmatprep.subr.mxu0 0.0
    %206 = vmatpush1.msra.mxu0 %v94
    %207 = vmatprep.subr.mxu0 0.0
    %208 = vmatpush1.msra.mxu0 0.0
    %209 = vmatprep.subr.mxu0 0.0
    %210 = vmatpush1.msra.mxu0 0.0
    %211 = vmatprep.subr.mxu0 0.0
    %212 = vmatpush1.msra.mxu0 0.0
    %213 = vmatprep.subr.mxu0 0.0
    %214 = vmatpush1.msra.mxu0 0.0
    %215 = vmatprep.subr.mxu0 0.0
    %216 = vmatpush1.msra.mxu0 0.0
    %217 = vmatprep.subr.mxu0 0.0
    %218 = vmatpush1.msra.mxu0 0.0
    %219 = vmatprep.subr.mxu0 0.0
    %220 = vmatpush1.msra.mxu0 0.0
    %221 = vmatprep.subr.mxu0 0.0
    %222 = vmatpush1.msra.mxu0 0.0
    %223 = vmatprep.subr.mxu0 0.0
    %224 = vmatpush1.msra.mxu0 0.0
    %225 = vmatprep.subr.mxu0 0.0
    %226 = vmatpush1.msra.mxu0 0.0
    %227 = vmatprep.subr.mxu0 0.0
    %228 = vmatpush1.msra.mxu0 0.0
    %229 = vmatprep.subr.mxu0 0.0
    %230 = vmatpush1.msra.mxu0 0.0
    %231 = vmatprep.subr.mxu0 0.0
    %232 = vmatpush1.msra.mxu0 0.0
    %233 = vmatprep.subr.mxu0 0.0
    %234 = vmatpush1.msra.mxu0 0.0
    %235 = vmatprep.subr.mxu0 0.0
    %236 = vmatpush1.msra.mxu0 0.0
    %237 = vmatprep.subr.mxu0 0.0
    %238 = vmatpush1.msra.mxu0 0.0
    %239 = vmatprep.subr.mxu0 0.0
    %240 = vmatpush1.msra.mxu0 0.0
    %241 = vmatprep.subr.mxu0 0.0
    %242 = vmatpush1.msra.mxu0 0.0
    %243 = vmatprep.subr.mxu0 0.0
    %244 = vmatpush1.msra.mxu0 0.0
    %245 = vmatprep.subr.mxu0 0.0
    %246 = vmatpush1.msra.mxu0 0.0
    %247 = vmatprep.subr.mxu0 0.0
    %248 = vmatpush1.msra.mxu0 0.0
    %249 = vmatprep.subr.mxu0 0.0
    %250 = vmatpush1.msra.mxu0 0.0
    %251 = vmatprep.subr.mxu0 0.0
    %252 = vmatpush1.msra.mxu0 0.0
    %253 = vmatprep.subr.mxu0 0.0
    %254 = vmatpush1.msra.mxu0 0.0
    %255 = vmatprep.mubr.f32.mxu0 0.0
    %256 = vmatmul.mubr.f32.gmra.mrb[0].mxu0 %v189
    %v257 = vpop.f32.mrb[0].mxu0
    %v258 = vadd.f32 %v186, %v257
    %v259 = vpop.f32.mrb[0].mxu0
    %260 = vdwg.mxu0
    %vm261 = vcmask 60416
    %262 = vst.msk [vmem:[#allocation2] sm:$0xf] %vm261, %v258
    // Predicated region
    $region18: #{unimodal_ehr_confidence_forward.1} parent=1 // pred_check
      _
    $region19: #{unimodal_ehr_confidence_forward.1} parent=1 // pred_check_branch
      %264 = sbr.rel (0) target = $region21
    $region20: #{unimodal_ehr_confidence_forward.1} parent=1 // pred_region
      %s266 = ssub.s32 64, 64
      %267 = vsyncadd [#allocation3], %s266
      %s269 = sshll.u32 [#allocation2], 4
      %s270 = int_to_ptr.vmem [resolvable:$true] %s269
      %272 = dma.vmem_to_hbm [thread:$0]  %s270, 64, %s4, [#allocation3]
    $region21: #{unimodal_ehr_confidence_forward.1} parent=1 // pred_fallthru
      _
    // Predicated region
    $region22: #{unimodal_ehr_confidence_forward.1} parent=1 // pred_check
      _
    $region23: #{unimodal_ehr_confidence_forward.1} parent=1 // pred_check_branch
      %274 = sbr.rel (0) target = $region25
    $region24: #{unimodal_ehr_confidence_forward.1} parent=1 // pred_region
      %275 = dma.done [#allocation3], 64
    $region25: #{unimodal_ehr_confidence_forward.1} parent=1 // pred_fallthru
      _
    %276 = vsyncpa [#allocation3], 1

</llo_original>
